<compile_context>
chip_gen: v6e
topology: v6e:2x2x1
jax: 0.10.0
libtpu: 0.0.40
codegen_flags: <defaults>
</compile_context>

<pallas_src>
import functools

import jax
import jax.numpy as jnp
from jax.experimental import pallas as pl
from jax.experimental.pallas import tpu as pltpu


def _round_up(x: int, m: int) -> int:
    return ((x + m - 1) // m) * m


def _layernorm_kernel(s_ref, w_ref, b_ref, o_ref, *, eps: float, inv_d: float):
    # Unpacked path: s_ref (TM, d_s); w_ref/b_ref (1, d_s) resident affine params.
    x = s_ref[...].astype(jnp.float32)
    mean = jnp.sum(x, axis=-1, keepdims=True) * inv_d
    xc = x - mean
    var = jnp.sum(xc * xc, axis=-1, keepdims=True) * inv_d
    inv = jax.lax.rsqrt(var + eps)
    y = xc * inv * w_ref[...].astype(jnp.float32) + b_ref[...].astype(jnp.float32)
    o_ref[...] = y.astype(o_ref.dtype)


def _layernorm_packed_kernel(s_ref, w_ref, b_ref, m_ref, o_ref, *,
                             eps: float, inv_d: float, mm_dtype):
    # Packed path: each 128-lane row holds k original rows (segments of length d_s).
    # m_ref: (K, K) block-diagonal ones matrix; x @ M broadcasts each segment's sum
    # back over its own lanes on the MXU (no in-kernel reshapes).
    x = s_ref[...].astype(jnp.float32)
    m = m_ref[...].astype(mm_dtype)
    mean = jnp.dot(x.astype(mm_dtype), m, preferred_element_type=jnp.float32) * inv_d
    xc = x - mean
    var = jnp.dot((xc * xc).astype(mm_dtype), m, preferred_element_type=jnp.float32) * inv_d
    inv = jax.lax.rsqrt(var + eps)
    y = xc * inv * w_ref[...].astype(jnp.float32) + b_ref[...].astype(jnp.float32)
    o_ref[...] = y.astype(o_ref.dtype)


def scalar_layernorm_pallas(s: jax.Array, weight: jax.Array, bias: jax.Array,
                            eps: float = 1e-5,
                            mask_matmul_dtype=jnp.float32) -> jax.Array:
    n, d_s = s.shape
    orig_dtype = s.dtype
    itemsize = jnp.dtype(orig_dtype).itemsize
    row_align = {4: 8, 2: 16, 1: 32}.get(itemsize, 8)

    # Lane packing factor: fold k consecutive rows into one 128-lane packed row.
    if d_s < 128 and 128 % d_s == 0:
        k = 128 // d_s
    else:
        k = 1
    # TODO(synk): extend packing to lcm(d_s,128)//d_s rows for d_s that neither divide
    # nor are multiples of 128 (e.g. 96, 192) so those shapes also get lane-dense stores.
    K = k * d_s

    # Only pad when n is not a multiple of k (< k rows); common case is a pure
    # contiguous reshape -> bitcast, zero extra HBM traffic.
    n_rem = n % k
    if n_rem:
        s = jnp.pad(s, ((0, k - n_rem), (0, 0)))
    n_padded = s.shape[0]
    n_packed = n_padded // k
    s_packed = s.reshape(n_packed, K)

    # Generation-aware VMEM budget: v7x has 64 MiB/TC (stay <= ~40 MiB), v5e/v6e 128 MiB.
    try:
        vmem_cap = int(getattr(pltpu.get_tpu_info(), "vmem_capacity_bytes", 0) or 0)
    except Exception:
        vmem_cap = 0
    if vmem_cap >= (100 << 20):
        vmem_budget, vmem_limit_cap = 56 << 20, 64 << 20     # v5e / v6e
    else:
        vmem_budget, vmem_limit_cap = 34 << 20, 40 << 20     # v7x-safe default

    # Bytes per packed row: double-buffered in+out blocks plus generous headroom
    # (~10x f32 block) for the kernel's f32 temporaries (x, mean, xc, xc^2, var, y, ...).
    per_row_bytes = 4 * K * itemsize + 10 * K * 4
    tile = vmem_budget // per_row_bytes
    tile = min(tile, 8192, _round_up(n_packed, row_align))
    tile = max(row_align, (tile // row_align) * row_align)

    # Megacore (v7x: 2 TCs share the "parallel" grid axis): prefer an even, balanced grid.
    if n_packed >= 2 * row_align:
        target_grid = max(pl.cdiv(n_packed, tile), 2)
        if target_grid % 2:
            target_grid += 1
        tile = max(row_align, _round_up(pl.cdiv(n_packed, target_grid), row_align))
    grid = pl.cdiv(n_packed, tile)
    if grid == 1:
        # Single step: use the exact row extent (full-dim block is always legal and
        # avoids any masked/ragged region entirely).
        tile = n_packed

    w2 = jnp.tile(weight.astype(jnp.float32), k).reshape(1, K)
    b2 = jnp.tile(bias.astype(jnp.float32), k).reshape(1, K)
    inv_d = 1.0 / float(d_s)

    # VMEM limit: 2x(in+out) pipeline buffers + f32 temporaries + resident params/mask.
    block_bytes_io = tile * K * itemsize
    vmem_est = 4 * block_bytes_io + 10 * tile * K * 4 + 3 * K * K * 4 + (2 << 20)
    vmem_limit = int(min(max(vmem_est, 16 << 20), vmem_limit_cap))

    compiler_params = pltpu.CompilerParams(
        dimension_semantics=("parallel",),
        vmem_limit_bytes=vmem_limit,
    )

    if k > 1:
        seg = jnp.arange(K, dtype=jnp.int32) // d_s
        block_mask = (seg[:, None] == seg[None, :]).astype(jnp.float32)
        kernel = functools.partial(_layernorm_packed_kernel, eps=eps, inv_d=inv_d,
                                   mm_dtype=mask_matmul_dtype)
        in_specs = [
            pl.BlockSpec((tile, K), lambda i: (i, 0)),
            pl.BlockSpec((1, K), lambda i: (0, 0)),
            pl.BlockSpec((1, K), lambda i: (0, 0)),
            pl.BlockSpec((K, K), lambda i: (0, 0)),
        ]
        args = (s_packed, w2, b2, block_mask)
    else:
        kernel = functools.partial(_layernorm_kernel, eps=eps, inv_d=inv_d)
        in_specs = [
            pl.BlockSpec((tile, K), lambda i: (i, 0)),
            pl.BlockSpec((1, K), lambda i: (0, 0)),
            pl.BlockSpec((1, K), lambda i: (0, 0)),
        ]
        args = (s_packed, w2, b2)

    out_packed = pl.pallas_call(
        kernel,
        out_shape=jax.ShapeDtypeStruct((n_packed, K), orig_dtype),
        grid_spec=pltpu.PrefetchScalarGridSpec(
            num_scalar_prefetch=0,
            grid=(grid,),
            in_specs=in_specs,
            out_specs=pl.BlockSpec((tile, K), lambda i: (i, 0)),
        ),
        compiler_params=compiler_params,
    )(*args)

    out = out_packed.reshape(n_padded, d_s)   # contiguous -> bitcast
    if n_rem:
        out = out[:n]                          # only when we padded (< k rows)
    return out


class GVPLayerNorm:
    """JAX/Pallas port of notorch LayerNorm: LayerNorm on scalar track, identity on vector track."""

    def __init__(self, dims):
        scalar_dim, _ = dims
        # nn.LayerNorm default init: weight = ones, bias = zeros (deterministic).
        self.weight = jnp.ones((scalar_dim,), dtype=jnp.float32)
        self.bias = jnp.zeros((scalar_dim,), dtype=jnp.float32)
        self.eps = 1e-5

    def __call__(self, inputs):
        s, V = inputs
        s_out = scalar_layernorm_pallas(s, self.weight, self.bias, eps=self.eps)
        return (s_out, V)  # vector track passes through unchanged, no kernel needed


def _reference_layernorm(s, weight, bias, eps=1e-5):
    x = s.astype(jnp.float32)
    mean = jnp.mean(x, axis=-1, keepdims=True)
    var = jnp.mean((x - mean) ** 2, axis=-1, keepdims=True)
    return (((x - mean) / jnp.sqrt(var + eps)) * weight + bias).astype(s.dtype)


if __name__ == "__main__":
    key = jax.random.PRNGKey(0)
    k_s, k_v, k_s2, k_s3 = jax.random.split(key, 4)

    # Case 1: the module's shapes — scalar track [n, d_s], vector track [n, r, d_v].
    n, d_s = 16, 32
    r, d_v = 3, 16
    s = jax.random.normal(k_s, (n, d_s), dtype=jnp.float32) * 2.0 + 0.5
    V = jax.random.normal(k_v, (n, r, d_v), dtype=jnp.float32)

    ln = GVPLayerNorm((d_s, d_v))
    s_out, V_out = ln((s, V))
    jax.block_until_ready(s_out)
    jax.block_until_ready(V_out)
    assert jnp.allclose(s_out, _reference_layernorm(s, ln.weight, ln.bias, ln.eps),
                        atol=1e-5, rtol=1e-5), "scalar LayerNorm mismatch (packed path)"
    assert jnp.array_equal(V_out, V), "vector track must be identity"

    # Case 2: awkward row count (exercises the n % k != 0 minimal-pad path).
    s_odd = jax.random.normal(k_s2, (13, d_s), dtype=jnp.float32) - 1.0
    out_odd = scalar_layernorm_pallas(s_odd, ln.weight, ln.bias, eps=ln.eps)
    jax.block_until_ready(out_odd)
    assert out_odd.shape == s_odd.shape
    assert jnp.allclose(out_odd, _reference_layernorm(s_odd, ln.weight, ln.bias, ln.eps),
                        atol=1e-5, rtol=1e-5), "scalar LayerNorm mismatch (odd n)"

    # Case 3: lane-aligned feature dim (unpacked path, ragged last block + 2-step grid).
    d_big = 128
    s_big = jax.random.normal(k_s3, (24, d_big), dtype=jnp.float32) * 0.7
    w_big = jnp.ones((d_big,), dtype=jnp.float32)
    b_big = jnp.zeros((d_big,), dtype=jnp.float32)
    out_big = scalar_layernorm_pallas(s_big, w_big, b_big)
    jax.block_until_ready(out_big)
    assert jnp.allclose(out_big, _reference_layernorm(s_big, w_big, b_big),
                        atol=1e-5, rtol=1e-5), "scalar LayerNorm mismatch (d_s=128)"

    print("KERNEL_OK")
</pallas_src>

<mosaic_0001>
module attributes {stable_mosaic.version = 11 : i64} {
  func.func @_layernorm_packed_kernel(%arg0: i32, %arg1: memref<4x128xf32, #tpu.memory_space<vmem>>, %arg2: memref<1x128xf32, #tpu.memory_space<vmem>>, %arg3: memref<1x128xf32, #tpu.memory_space<vmem>>, %arg4: memref<128x128xf32, #tpu.memory_space<vmem>>, %arg5: memref<4x128xf32, #tpu.memory_space<vmem>>) attributes {dimension_semantics = [#tpu.dimension_semantics<parallel>], iteration_bounds = array<i64: 1>, scalar_prefetch = 0 : i64, scratch_operands = 0 : i64, tpu.core_type = #tpu.core_type<tc>, window_params = [{transform_indices = @transform_0, window_bounds = array<i64: 4, 128>}, {pipeline_mode = #tpu.pipeline_mode<synchronous>, transform_indices = @transform_1, window_bounds = array<i64: 1, 128>}, {pipeline_mode = #tpu.pipeline_mode<synchronous>, transform_indices = @transform_2, window_bounds = array<i64: 1, 128>}, {pipeline_mode = #tpu.pipeline_mode<synchronous>, transform_indices = @transform_3, window_bounds = array<i64: 128, 128>}, {transform_indices = @transform_4, window_bounds = array<i64: 4, 128>}]} {
    %c0 = arith.constant 0 : index
    %c0_0 = arith.constant 0 : index
    %0 = vector.load %arg1[%c0, %c0_0] : memref<4x128xf32, #tpu.memory_space<vmem>>, vector<4x128xf32>
    %c0_1 = arith.constant 0 : index
    %c0_2 = arith.constant 0 : index
    %1 = vector.load %arg4[%c0_1, %c0_2] : memref<128x128xf32, #tpu.memory_space<vmem>>, vector<128x128xf32>
    %cst = arith.constant dense<0.000000e+00> : vector<4x128xf32>
    %2 = tpu.matmul %0, %1, %cst {dimension_numbers = #tpu.dot_dimension_numbers<[1], [0], [0], [1], [0, 0, 1, 1], [], []>} : vector<4x128xf32>, vector<128x128xf32>, vector<4x128xf32> -> vector<4x128xf32>
    %cst_3 = arith.constant 3.125000e-02 : f32
    %3 = vector.broadcast %cst_3 : f32 to vector<4x128xf32>
    %4 = arith.mulf %2, %3 : vector<4x128xf32>
    %5 = arith.subf %0, %4 : vector<4x128xf32>
    %6 = arith.mulf %5, %5 : vector<4x128xf32>
    %cst_4 = arith.constant dense<0.000000e+00> : vector<4x128xf32>
    %7 = tpu.matmul %6, %1, %cst_4 {dimension_numbers = #tpu.dot_dimension_numbers<[1], [0], [0], [1], [0, 0, 1, 1], [], []>} : vector<4x128xf32>, vector<128x128xf32>, vector<4x128xf32> -> vector<4x128xf32>
    %cst_5 = arith.constant 3.125000e-02 : f32
    %8 = vector.broadcast %cst_5 : f32 to vector<4x128xf32>
    %9 = arith.mulf %7, %8 : vector<4x128xf32>
    %cst_6 = arith.constant 9.99999974E-6 : f32
    %10 = vector.broadcast %cst_6 : f32 to vector<4x128xf32>
    %11 = arith.addf %9, %10 : vector<4x128xf32>
    %12 = math.rsqrt %11 : vector<4x128xf32>
    %13 = arith.mulf %5, %12 : vector<4x128xf32>
    %c0_7 = arith.constant 0 : index
    %c0_8 = arith.constant 0 : index
    %14 = vector.load %arg2[%c0_7, %c0_8] : memref<1x128xf32, #tpu.memory_space<vmem>>, vector<1x128xf32>
    %15 = vector.broadcast %14 : vector<1x128xf32> to vector<4x128xf32>
    %16 = arith.mulf %13, %15 : vector<4x128xf32>
    %c0_9 = arith.constant 0 : index
    %c0_10 = arith.constant 0 : index
    %17 = vector.load %arg3[%c0_9, %c0_10] : memref<1x128xf32, #tpu.memory_space<vmem>>, vector<1x128xf32>
    %18 = vector.broadcast %17 : vector<1x128xf32> to vector<4x128xf32>
    %19 = arith.addf %16, %18 : vector<4x128xf32>
    %c0_11 = arith.constant 0 : index
    %c0_12 = arith.constant 0 : index
    %20 = vector.load %arg5[%c0_11, %c0_12] : memref<4x128xf32, #tpu.memory_space<vmem>>, vector<4x128xf32>
    tpu.vector_store %arg5[%c0_11, %c0_12], %19 {strides = array<i32>} : memref<4x128xf32, #tpu.memory_space<vmem>>, vector<4x128xf32>,
    return
  }
  func.func @transform_0(%arg0: i32) -> (i32, i32) {
    %c0_i32 = arith.constant 0 : i32
    %c0_i32_0 = arith.constant 0 : i32
    return %arg0, %c0_i32 : i32, i32
  }
  func.func @transform_1(%arg0: i32) -> (i32, i32) {
    %c0_i32 = arith.constant 0 : i32
    %c0_i32_0 = arith.constant 0 : i32
    %c0_i32_1 = arith.constant 0 : i32
    return %c0_i32, %c0_i32_0 : i32, i32
  }
  func.func @transform_2(%arg0: i32) -> (i32, i32) {
    %c0_i32 = arith.constant 0 : i32
    %c0_i32_0 = arith.constant 0 : i32
    %c0_i32_1 = arith.constant 0 : i32
    return %c0_i32, %c0_i32_0 : i32, i32
  }
  func.func @transform_3(%arg0: i32) -> (i32, i32) {
    %c0_i32 = arith.constant 0 : i32
    %c0_i32_0 = arith.constant 0 : i32
    %c0_i32_1 = arith.constant 0 : i32
    return %c0_i32, %c0_i32_0 : i32, i32
  }
  func.func @transform_4(%arg0: i32) -> (i32, i32) {
    %c0_i32 = arith.constant 0 : i32
    %c0_i32_0 = arith.constant 0 : i32
    return %arg0, %c0_i32 : i32, i32
  }
}

</mosaic_0001>

<llo_original>
// kernel: tpu_custom_call.1
$region0: #{tpu_custom_call.1}
  #allocation0 [shape = 'u32[]', space=smem, size = 0x4, offset = 0x4, fixed_abs, tag = 'smem constant byte address 0x4 - core index']
  #allocation1 [shape = 'u32[144,128]{1,0:T(1,128)}', space=vmem, size = 0x12000, scoped, tag = 'internal scratch']
  %s0 = inlined_call_operand.hbm [shape: f32[4,128], index: 0, kind: input, shape index: {}]
  %s1 = inlined_call_operand.vmem [shape: f32[1,128], index: 1, kind: input, shape index: {}]
  %s2 = inlined_call_operand.vmem [shape: f32[1,128], index: 2, kind: input, shape index: {}]
  %s3 = inlined_call_operand.hbm [shape: f32[128,128], index: 3, kind: input, shape index: {}]
  %s4 = inlined_call_operand.hbm [shape: f32[4,128], index: 4, kind: output, shape index: {}]
  %s5 = sld [smem:[#allocation0]]
  $region34: #{tpu_custom_call.1} parent=0
    _
  %s7 = ssub.s32 1, %s5
  %s8 = scalar_select 0, %s7, %s5
  $region1: #{tpu_custom_call.1} parent=0
    #allocation2 [shape = 'u8[2048]{0}', space=vmem, size = 0x800, scoped, tag = 'input window, operand 0, single buffered']
    #allocation3 [shape = 's32[1]{0}', space=sflag, size = 0x4, scoped, tag = 'scoped memory for tpu_custom_call.1']
    #allocation4 [shape = 's32[1]{0}', space=sflag, size = 0x4, scoped, tag = 'scoped memory for tpu_custom_call.1']
    #allocation5 [shape = 'u8[65536]{0}', space=vmem, size = 0x10000, scoped, tag = 'input window, operand 3, single buffered']
    #allocation6 [shape = 's32[1]{0}', space=sflag, size = 0x4, scoped, tag = 'scoped memory for tpu_custom_call.1']
    #allocation7 [shape = 'u8[2048]{0}', space=vmem, size = 0x800, scoped, tag = 'output window, operand 0, single buffered']
    %9 = vsyncpa [#allocation3], 0
    %10 = vsyncpa [#allocation6], 0
    %11 = vsyncpa [#allocation4], 0
    // Predicated region
    $region2: #{tpu_custom_call.1} parent=1 // pred_check
      _
    $region3: #{tpu_custom_call.1} parent=1 // pred_check_branch
      %13 = sbr.rel (0) target = $region5
    $region4: #{tpu_custom_call.1} parent=1 // pred_region
      %s15 = ssub.s32 64, 64
      %16 = vsyncadd [#allocation3], %s15
      %s18 = sshll.u32 [#allocation2], 4
      %s19 = int_to_ptr.vmem [resolvable:$true] %s18
      %21 = dma.hbm_to_vmem [thread:$0]  %s0, 64, %s19, [#allocation3]
    $region5: #{tpu_custom_call.1} parent=1 // pred_fallthru
      _
    // Predicated region
    $region6: #{tpu_custom_call.1} parent=1 // pred_check
      _
    $region7: #{tpu_custom_call.1} parent=1 // pred_check_branch
      %23 = sbr.rel (0) target = $region9
    $region8: #{tpu_custom_call.1} parent=1 // pred_region
      _
    $region9: #{tpu_custom_call.1} parent=1 // pred_fallthru
      _
    // Predicated region
    $region10: #{tpu_custom_call.1} parent=1 // pred_check
      _
    $region11: #{tpu_custom_call.1} parent=1 // pred_check_branch
      %25 = sbr.rel (0) target = $region13
    $region12: #{tpu_custom_call.1} parent=1 // pred_region
      _
    $region13: #{tpu_custom_call.1} parent=1 // pred_fallthru
      _
    // Predicated region
    $region14: #{tpu_custom_call.1} parent=1 // pred_check
      _
    $region15: #{tpu_custom_call.1} parent=1 // pred_check_branch
      %27 = sbr.rel (0) target = $region17
    $region16: #{tpu_custom_call.1} parent=1 // pred_region
      %s29 = ssub.s32 2048, 2048
      %30 = vsyncadd [#allocation6], %s29
      %s31 = sshll.u32 [#allocation5], 4
      %s32 = int_to_ptr.vmem [resolvable:$true] %s31
      %37 = dma.hbm_to_vmem [thread:$0]  %s3, 2048, %s32, [#allocation6], 128, 128, 8
    $region17: #{tpu_custom_call.1} parent=1 // pred_fallthru
      _
    // Predicated region
    $region18: #{tpu_custom_call.1} parent=1 // pred_check
      _
    $region19: #{tpu_custom_call.1} parent=1 // pred_check_branch
      %39 = sbr.rel (0) target = $region21
    $region20: #{tpu_custom_call.1} parent=1 // pred_region
      %40 = dma.done [#allocation3], 64
    $region21: #{tpu_custom_call.1} parent=1 // pred_fallthru
      _
    // Predicated region
    $region22: #{tpu_custom_call.1} parent=1 // pred_check
      _
    $region23: #{tpu_custom_call.1} parent=1 // pred_check_branch
      %42 = sbr.rel (0) target = $region25
    $region24: #{tpu_custom_call.1} parent=1 // pred_region
      %43 = dma.done [#allocation6], 2048
    $region25: #{tpu_custom_call.1} parent=1 // pred_fallthru
      _
    %v44 = vld [vmem:[#allocation2] sm:$0xf]
    %v45 = vld [vmem:[#allocation5] sm:$0xff]
    %v46 = vld [vmem:[#allocation5 + $0x8] sm:$0xff]
    %v47 = vld [vmem:[#allocation5 + $0x10] sm:$0xff]
    %v48 = vld [vmem:[#allocation5 + $0x18] sm:$0xff]
    %v49 = vld [vmem:[#allocation5 + $0x20] sm:$0xff]
    %v50 = vld [vmem:[#allocation5 + $0x28] sm:$0xff]
    %v51 = vld [vmem:[#allocation5 + $0x30] sm:$0xff]
    %v52 = vld [vmem:[#allocation5 + $0x38] sm:$0xff]
    %v53 = vld [vmem:[#allocation5 + $0x40] sm:$0xff]
    %v54 = vld [vmem:[#allocation5 + $0x48] sm:$0xff]
    %v55 = vld [vmem:[#allocation5 + $0x50] sm:$0xff]
    %v56 = vld [vmem:[#allocation5 + $0x58] sm:$0xff]
    %v57 = vld [vmem:[#allocation5 + $0x60] sm:$0xff]
    %v58 = vld [vmem:[#allocation5 + $0x68] sm:$0xff]
    %v59 = vld [vmem:[#allocation5 + $0x70] sm:$0xff]
    %v60 = vld [vmem:[#allocation5 + $0x78] sm:$0xff]
    %61 = vmatprep.subr.mxu0 0.0
    %62 = vmatpush1.msra.mxu0 %v60
    %63 = vmatprep.subr.mxu0 0.0
    %64 = vmatpush1.msra.mxu0 %v59
    %65 = vmatprep.subr.mxu0 0.0
    %66 = vmatpush1.msra.mxu0 %v58
    %67 = vmatprep.subr.mxu0 0.0
    %68 = vmatpush1.msra.mxu0 %v57
    %69 = vmatprep.subr.mxu0 0.0
    %70 = vmatpush1.msra.mxu0 %v56
    %71 = vmatprep.subr.mxu0 0.0
    %72 = vmatpush1.msra.mxu0 %v55
    %73 = vmatprep.subr.mxu0 0.0
    %74 = vmatpush1.msra.mxu0 %v54
    %75 = vmatprep.subr.mxu0 0.0
    %76 = vmatpush1.msra.mxu0 %v53
    %77 = vmatprep.subr.mxu0 0.0
    %78 = vmatpush1.msra.mxu0 %v52
    %79 = vmatprep.subr.mxu0 0.0
    %80 = vmatpush1.msra.mxu0 %v51
    %81 = vmatprep.subr.mxu0 0.0
    %82 = vmatpush1.msra.mxu0 %v50
    %83 = vmatprep.subr.mxu0 0.0
    %84 = vmatpush1.msra.mxu0 %v49
    %85 = vmatprep.subr.mxu0 0.0
    %86 = vmatpush1.msra.mxu0 %v48
    %87 = vmatprep.subr.mxu0 0.0
    %88 = vmatpush1.msra.mxu0 %v47
    %89 = vmatprep.subr.mxu0 0.0
    %90 = vmatpush1.msra.mxu0 %v46
    %91 = vmatprep.subr.mxu0 0.0
    %92 = vmatpush1.msra.mxu0 %v45
    %93 = vmatprep.subr.mxu0 0.0
    %94 = vmatpush2.msra.mxu0 0.0
    %95 = vmatprep.subr.mxu0 0.0
    %96 = vmatpush2.msra.mxu0 0.0
    %97 = vmatprep.subr.mxu0 0.0
    %98 = vmatpush2.msra.mxu0 0.0
    %99 = vmatprep.subr.mxu0 0.0
    %100 = vmatpush2.msra.mxu0 0.0
    %101 = vmatprep.subr.mxu0 0.0
    %102 = vmatpush2.msra.mxu0 0.0
    %103 = vmatprep.subr.mxu0 0.0
    %104 = vmatpush2.msra.mxu0 0.0
    %105 = vmatprep.subr.mxu0 0.0
    %106 = vmatpush2.msra.mxu0 0.0
    %107 = vmatprep.subr.mxu0 0.0
    %108 = vmatpush2.msra.mxu0 0.0
    %109 = vmatprep.subr.mxu0 0.0
    %110 = vmatpush2.msra.mxu0 0.0
    %111 = vmatprep.subr.mxu0 0.0
    %112 = vmatpush2.msra.mxu0 0.0
    %113 = vmatprep.subr.mxu0 0.0
    %114 = vmatpush2.msra.mxu0 0.0
    %115 = vmatprep.subr.mxu0 0.0
    %116 = vmatpush2.msra.mxu0 0.0
    %117 = vmatprep.subr.mxu0 0.0
    %118 = vmatpush2.msra.mxu0 0.0
    %119 = vmatprep.subr.mxu0 0.0
    %120 = vmatpush2.msra.mxu0 0.0
    %121 = vmatprep.subr.mxu0 0.0
    %122 = vmatpush2.msra.mxu0 0.0
    %123 = vmatprep.subr.mxu0 0.0
    %124 = vmatpush2.msra.mxu0 0.0
    %125 = vmatprep.mubr.f32.mxu0 0.0
    %126 = vmatmul.mubr.f32.gmra.mxu0 %v44
    %v127 = vpop.f32.mrf.mxu0
    %v128 = vadd.f32 0.0, %v127
    %v129 = vpop.f32.mrf.mxu0
    %130 = vdwg.mxu0
    %v131 = vmul.f32 %v128, 0.03125
    %v132 = vsub.f32 %v44, %v131
    %v133 = vmul.f32 %v132, %v132
    %134 = vmatprep.subr.mxu0 0.0
    %135 = vmatpush1.msra.mxu0 %v60
    %136 = vmatprep.subr.mxu0 0.0
    %137 = vmatpush1.msra.mxu0 %v59
    %138 = vmatprep.subr.mxu0 0.0
    %139 = vmatpush1.msra.mxu0 %v58
    %140 = vmatprep.subr.mxu0 0.0
    %141 = vmatpush1.msra.mxu0 %v57
    %142 = vmatprep.subr.mxu0 0.0
    %143 = vmatpush1.msra.mxu0 %v56
    %144 = vmatprep.subr.mxu0 0.0
    %145 = vmatpush1.msra.mxu0 %v55
    %146 = vmatprep.subr.mxu0 0.0
    %147 = vmatpush1.msra.mxu0 %v54
    %148 = vmatprep.subr.mxu0 0.0
    %149 = vmatpush1.msra.mxu0 %v53
    %150 = vmatprep.subr.mxu0 0.0
    %151 = vmatpush1.msra.mxu0 %v52
    %152 = vmatprep.subr.mxu0 0.0
    %153 = vmatpush1.msra.mxu0 %v51
    %154 = vmatprep.subr.mxu0 0.0
    %155 = vmatpush1.msra.mxu0 %v50
    %156 = vmatprep.subr.mxu0 0.0
    %157 = vmatpush1.msra.mxu0 %v49
    %158 = vmatprep.subr.mxu0 0.0
    %159 = vmatpush1.msra.mxu0 %v48
    %160 = vmatprep.subr.mxu0 0.0
    %161 = vmatpush1.msra.mxu0 %v47
    %162 = vmatprep.subr.mxu0 0.0
    %163 = vmatpush1.msra.mxu0 %v46
    %164 = vmatprep.subr.mxu0 0.0
    %165 = vmatpush1.msra.mxu0 %v45
    %166 = vmatprep.subr.mxu0 0.0
    %167 = vmatpush2.msra.mxu0 0.0
    %168 = vmatprep.subr.mxu0 0.0
    %169 = vmatpush2.msra.mxu0 0.0
    %170 = vmatprep.subr.mxu0 0.0
    %171 = vmatpush2.msra.mxu0 0.0
    %172 = vmatprep.subr.mxu0 0.0
    %173 = vmatpush2.msra.mxu0 0.0
    %174 = vmatprep.subr.mxu0 0.0
    %175 = vmatpush2.msra.mxu0 0.0
    %176 = vmatprep.subr.mxu0 0.0
    %177 = vmatpush2.msra.mxu0 0.0
    %178 = vmatprep.subr.mxu0 0.0
    %179 = vmatpush2.msra.mxu0 0.0
    %180 = vmatprep.subr.mxu0 0.0
    %181 = vmatpush2.msra.mxu0 0.0
    %182 = vmatprep.subr.mxu0 0.0
    %183 = vmatpush2.msra.mxu0 0.0
    %184 = vmatprep.subr.mxu0 0.0
    %185 = vmatpush2.msra.mxu0 0.0
    %186 = vmatprep.subr.mxu0 0.0
    %187 = vmatpush2.msra.mxu0 0.0
    %188 = vmatprep.subr.mxu0 0.0
    %189 = vmatpush2.msra.mxu0 0.0
    %190 = vmatprep.subr.mxu0 0.0
    %191 = vmatpush2.msra.mxu0 0.0
    %192 = vmatprep.subr.mxu0 0.0
    %193 = vmatpush2.msra.mxu0 0.0
    %194 = vmatprep.subr.mxu0 0.0
    %195 = vmatpush2.msra.mxu0 0.0
    %196 = vmatprep.subr.mxu0 0.0
    %197 = vmatpush2.msra.mxu0 0.0
    %198 = vmatprep.mubr.f32.mxu0 0.0
    %199 = vmatmul.mubr.f32.gmra.mxu0 %v133
    %v200 = vpop.f32.mrf.mxu0
    %v201 = vadd.f32 0.0, %v200
    %v202 = vpop.f32.mrf.mxu0
    %203 = vdwg.mxu0
    %v204 = vmul.f32 %v201, 0.03125
    %v205 = vadd.f32 %v204, 1e-05
    %v206 = vrsqrt.pop %v205
    %v207 = vmul.f32 %v132, %v206
    %v208 = vld [vmem:[%s1] sm:$0x1]
    %v210 = vlaneseq
    %v211 = vshrl.u32 %v210, 7
    %v212 = vsub.s32 0, %v211
    %v213 = vrot.slane %v208, %v212
    %v215 = vmul.f32 %v207, %v213
    %v216 = vld [vmem:[%s2] sm:$0x1]
    %v218 = vlaneseq
    %v219 = vshrl.u32 %v218, 7
    %v220 = vsub.s32 0, %v219
    %v221 = vrot.slane %v216, %v220
    %v223 = vadd.f32 %v215, %v221
    %224 = vst [vmem:[#allocation7] sm:$0xf] %v223
    // Predicated region
    $region26: #{tpu_custom_call.1} parent=1 // pred_check
      _
    $region27: #{tpu_custom_call.1} parent=1 // pred_check_branch
      %226 = sbr.rel (0) target = $region29
    $region28: #{tpu_custom_call.1} parent=1 // pred_region
      %s228 = ssub.s32 64, 64
      %229 = vsyncadd [#allocation4], %s228
      %s231 = sshll.u32 [#allocation7], 4
      %s232 = int_to_ptr.vmem [resolvable:$true] %s231
      %234 = dma.vmem_to_hbm [thread:$0]  %s232, 64, %s4, [#allocation4]
    $region29: #{tpu_custom_call.1} parent=1 // pred_fallthru
      _
    // Predicated region
    $region30: #{tpu_custom_call.1} parent=1 // pred_check
      _
    $region31: #{tpu_custom_call.1} parent=1 // pred_check_branch
      %236 = sbr.rel (0) target = $region33
    $region32: #{tpu_custom_call.1} parent=1 // pred_region
      %237 = dma.done [#allocation4], 64
    $region33: #{tpu_custom_call.1} parent=1 // pred_fallthru
      _
    %238 = vsyncpa [#allocation3], 1
    %239 = vsyncpa [#allocation6], 1
    %240 = vsyncpa [#allocation4], 1

</llo_original>
